<compile_context>
chip_gen: v5e
topology: v5e:2x2
jax: 0.10.0
libtpu: 0.0.40
codegen_flags: <defaults>
</compile_context>

<pallas_src>
import functools

import jax
import jax.numpy as jnp
from jax import lax
from jax.experimental import pallas as pl
from jax.experimental.pallas import tpu as pltpu


def _moe_kernel(x_ref, gwt_ref, gb_ref, w1t_ref, w2t_ref, w3t_ref,
                o_ref, acc_ref, wroute_ref, *, top_k):
    # x_ref:    (tm, H)     token tile
    # gwt_ref:  (H, E)      gate weight, pre-transposed
    # gb_ref:   (1, E)      gate bias
    # w1t_ref:  (1, H, ti)  gate-proj slab for expert e, I-slice i
    # w2t_ref:  (1, ti, H)  down-proj slab for expert e, I-slice i
    # w3t_ref:  (1, H, ti)  up-proj slab for expert e, I-slice i
    # o_ref:    (tm, H)     output tile (resident across the e/i axes)
    # acc_ref:  (tm, H) f32 VMEM accumulator
    # wroute_ref: (tm, E) f32 cached routing weights for this token tile
    e_idx = pl.program_id(1)
    i_idx = pl.program_id(2)
    is_first = jnp.logical_and(e_idx == 0, i_idx == 0)
    is_last = jnp.logical_and(e_idx == pl.num_programs(1) - 1,
                              i_idx == pl.num_programs(2) - 1)

    x = x_ref[...]                                      # (tm, H)
    num_experts = gwt_ref.shape[1]

    # ---- gating: once per token tile -------------------------------------
    @pl.when(is_first)
    def _():
        logits = jnp.dot(x, gwt_ref[...], preferred_element_type=jnp.float32)
        logits = logits + gb_ref[...].astype(jnp.float32)          # (tm, E)
        m = jnp.max(logits, axis=-1, keepdims=True)
        # Un-normalized exponentials: top-k ordering and the renormalized
        # weights are invariant to the global softmax denominator.
        p = jnp.exp(logits - m)
        # Top-k via rank counting (ties break toward the lower expert index,
        # matching torch.topk / lax.top_k ordering).
        lane = lax.broadcasted_iota(jnp.int32, p.shape, 1)
        rank = jnp.zeros(p.shape, jnp.int32)
        for ee in range(num_experts):                   # static unroll, E small
            pe = p[:, ee:ee + 1]
            beats = (pe > p) | ((pe == p) & (ee < lane))
            rank = rank + beats.astype(jnp.int32)
        sel = (rank < top_k).astype(jnp.float32)
        w = p * sel
        w = w / jnp.sum(w, axis=-1, keepdims=True)      # renorm over top-k
        wroute_ref[...] = w
        acc_ref[...] = jnp.zeros_like(acc_ref)

    # ---- expert partial: expert e_idx, intermediate slice i_idx -----------
    g = jnp.dot(x, w1t_ref[0], preferred_element_type=jnp.float32)   # (tm, ti)
    u = jnp.dot(x, w3t_ref[0], preferred_element_type=jnp.float32)   # (tm, ti)
    h = (g * jax.nn.sigmoid(g)) * u                                  # silu(g)*u
    oe = jnp.dot(h.astype(w2t_ref.dtype), w2t_ref[0],
                 preferred_element_type=jnp.float32)                 # (tm, H)

    # Pull this expert's routing column from the cached (tm, E) weights.
    lane = lax.broadcasted_iota(jnp.int32, wroute_ref.shape, 1)
    we = jnp.sum(jnp.where(lane == e_idx, wroute_ref[...], 0.0),
                 axis=-1, keepdims=True)                             # (tm, 1)
    acc_ref[...] = acc_ref[...] + we * oe

    @pl.when(is_last)
    def _():
        o_ref[...] = acc_ref[...].astype(o_ref.dtype)


def _vmem_budget_bytes():
    # Generation-aware scoped-VMEM budget: ~3/4 of capacity, capped at 96 MiB
    # (v5e/v6e have 128 MiB, v7x only 64 MiB per TensorCore).
    try:
        cap = pltpu.get_tpu_info().vmem_capacity_bytes
        return int(min(cap * 3 // 4, 96 * 1024 * 1024))
    except Exception:
        return 48 * 1024 * 1024


def moe_forward(x, gate_w, gate_b, w1, w2, w3, *, top_k, tm=128, ti=512):
    """x: [M, H]; gate_w: [E, H]; gate_b: [E]; w1/w3: [E, I, H]; w2: [E, H, I]."""
    M, H = x.shape
    E, I, _ = w1.shape
    tm = min(tm, M)   # pick tm so M/tm is even on v7x to use both TensorCores
    ti = min(ti, I)
    grid = (pl.cdiv(M, tm), E, pl.cdiv(I, ti))

    # One-time layout prep so in-kernel matmuls contract the minor dim with
    # lane-dense outputs.  In production do this once at weight-load time.
    gwt = gate_w.T                       # [H, E]
    gb2 = gate_b.reshape(1, E)           # [1, E]
    w1t = jnp.transpose(w1, (0, 2, 1))   # [E, H, I]
    w3t = jnp.transpose(w3, (0, 2, 1))   # [E, H, I]
    w2t = jnp.transpose(w2, (0, 2, 1))   # [E, I, H]

    n_t = pl.cdiv(M, tm)
    itemsize_x = x.dtype.itemsize
    itemsize_w = w1.dtype.itemsize
    flops = 2 * M * H * E + 6 * M * H * I * E
    transcendentals = M * E + M * I * E
    bytes_accessed = int(
        M * H * itemsize_x                       # x read
        + M * H * itemsize_x                     # out written
        + (H * E + E) * gate_w.dtype.itemsize    # gate weight + bias
        + n_t * 3 * E * I * H * itemsize_w       # expert weights per token tile
    )

    return pl.pallas_call(
        functools.partial(_moe_kernel, top_k=top_k),
        out_shape=jax.ShapeDtypeStruct((M, H), x.dtype),
        grid_spec=pltpu.PrefetchScalarGridSpec(
            num_scalar_prefetch=0,
            grid=grid,
            in_specs=[
                pl.BlockSpec((tm, H), lambda t, e, i: (t, 0)),
                # gate weight/bias: constant index maps, tiny (H*E) — default
                # double-buffering costs negligible VMEM here.
                pl.BlockSpec((H, E), lambda t, e, i: (0, 0)),
                pl.BlockSpec((1, E), lambda t, e, i: (0, 0)),
                # streamed expert-weight slabs
                pl.BlockSpec((1, H, ti), lambda t, e, i: (e, 0, i)),   # w1t
                pl.BlockSpec((1, ti, H), lambda t, e, i: (e, i, 0)),   # w2t
                pl.BlockSpec((1, H, ti), lambda t, e, i: (e, 0, i)),   # w3t
            ],
            out_specs=pl.BlockSpec((tm, H), lambda t, e, i: (t, 0)),
            scratch_shapes=[
                pltpu.VMEM((tm, H), jnp.float32),   # output accumulator
                pltpu.VMEM((tm, E), jnp.float32),   # cached routing weights
            ],
        ),
        compiler_params=pltpu.CompilerParams(
            dimension_semantics=("parallel", "arbitrary", "arbitrary"),
            vmem_limit_bytes=_vmem_budget_bytes(),
        ),
        cost_estimate=pl.CostEstimate(
            flops=flops,
            transcendentals=transcendentals,
            bytes_accessed=bytes_accessed,
        ),
    )(x, gwt, gb2, w1t, w2t, w3t)


def moe_ref(x, gate_w, gate_b, w1, w2, w3, top_k):
    """Plain-JAX reference matching the PyTorch module semantics."""
    xf = x.astype(jnp.float32)
    logits = xf @ gate_w.astype(jnp.float32).T + gate_b.astype(jnp.float32)
    probs = jax.nn.softmax(logits, axis=-1)
    topw, topi = lax.top_k(probs, top_k)
    topw = topw / jnp.sum(topw, axis=-1, keepdims=True)
    M, E = probs.shape
    w_full = jnp.zeros((M, E), jnp.float32).at[
        jnp.arange(M)[:, None], topi].add(topw)
    out = jnp.zeros_like(xf)
    for e in range(E):
        g = xf @ w1[e].astype(jnp.float32).T
        u = xf @ w3[e].astype(jnp.float32).T
        h = jax.nn.silu(g) * u
        out = out + w_full[:, e:e + 1] * (h @ w2[e].astype(jnp.float32).T)
    return out


if __name__ == "__main__":
    # Shapes from MoEOpModel defaults / get_input: x = (2, hidden_size)
    hidden_size, intermediate_size, num_experts, top_k = 32, 16, 4, 2
    batch = 2

    key = jax.random.PRNGKey(0)
    kx, kg, kb, k1, k2, k3 = jax.random.split(key, 6)

    x = jax.random.normal(kx, (batch, hidden_size), jnp.float32)
    gate_w = jax.random.normal(kg, (num_experts, hidden_size), jnp.float32) * 0.1
    gate_b = jax.random.normal(kb, (num_experts,), jnp.float32) * 0.1
    w1 = jax.random.normal(k1, (num_experts, intermediate_size, hidden_size), jnp.float32) * 0.1
    w2 = jax.random.normal(k2, (num_experts, hidden_size, intermediate_size), jnp.float32) * 0.1
    w3 = jax.random.normal(k3, (num_experts, intermediate_size, hidden_size), jnp.float32) * 0.1

    # f32 path: exact check against the plain-JAX reference.
    out = moe_forward(x, gate_w, gate_b, w1, w2, w3, top_k=top_k)
    jax.block_until_ready(out)
    ref = moe_ref(x, gate_w, gate_b, w1, w2, w3, top_k)
    assert out.shape == (batch, hidden_size)
    assert jnp.allclose(out, ref, atol=2e-3, rtol=2e-3), "mismatch vs reference"

    # bf16 path (module's default dtype; the MXU-friendly configuration per the
    # perf review). Smoke-run: a routing flip at a near-tie under bf16 rounding
    # would make a direct f32 comparison flaky, so only check shape/finiteness.
    bf16 = jnp.bfloat16
    out_bf16 = moe_forward(
        x.astype(bf16), gate_w.astype(bf16), gate_b.astype(bf16),
        w1.astype(bf16), w2.astype(bf16), w3.astype(bf16), top_k=top_k)
    jax.block_until_ready(out_bf16)
    assert out_bf16.shape == (batch, hidden_size)
    assert bool(jnp.isfinite(out_bf16.astype(jnp.float32)).all())

    print("KERNEL_OK")
</pallas_src>

<mosaic_0001>
module attributes {stable_mosaic.version = 11 : i64} {
  func.func @_moe_kernel(%arg0: i32, %arg1: i32, %arg2: i32, %arg3: memref<2x32xf32, #tpu.memory_space<vmem>>, %arg4: memref<32x4xf32, #tpu.memory_space<vmem>>, %arg5: memref<1x4xf32, #tpu.memory_space<vmem>>, %arg6: memref<1x32x16xf32, #tpu.memory_space<vmem>>, %arg7: memref<1x16x32xf32, #tpu.memory_space<vmem>>, %arg8: memref<1x32x16xf32, #tpu.memory_space<vmem>>, %arg9: memref<2x32xf32, #tpu.memory_space<vmem>>, %arg10: memref<2x32xf32, #tpu.memory_space<vmem>>, %arg11: memref<2x4xf32, #tpu.memory_space<vmem>>) attributes {dimension_semantics = [#tpu.dimension_semantics<parallel>, #tpu.dimension_semantics<arbitrary>, #tpu.dimension_semantics<arbitrary>], iteration_bounds = array<i64: 1, 4, 1>, scalar_prefetch = 0 : i64, scratch_operands = 2 : i64, tpu.core_type = #tpu.core_type<tc>, window_params = [{transform_indices = @transform_0, window_bounds = array<i64: 2, 32>}, {pipeline_mode = #tpu.pipeline_mode<synchronous>, transform_indices = @transform_1, window_bounds = array<i64: 32, 4>}, {pipeline_mode = #tpu.pipeline_mode<synchronous>, transform_indices = @transform_2, window_bounds = array<i64: 1, 4>}, {transform_indices = @transform_3, window_bounds = array<i64: 1, 32, 16>}, {transform_indices = @transform_4, window_bounds = array<i64: 1, 16, 32>}, {transform_indices = @transform_5, window_bounds = array<i64: 1, 32, 16>}, {transform_indices = @transform_6, window_bounds = array<i64: 2, 32>}]} {
    %c0_i32 = arith.constant 0 : i32
    %0 = arith.cmpi eq, %arg1, %c0_i32 : i32
    %c0_i32_0 = arith.constant 0 : i32
    %1 = arith.cmpi eq, %arg2, %c0_i32_0 : i32
    %2 = arith.andi %0, %1 : i1
    %c3_i32 = arith.constant 3 : i32
    %3 = arith.cmpi eq, %arg1, %c3_i32 : i32
    %c0_i32_1 = arith.constant 0 : i32
    %4 = arith.cmpi eq, %arg2, %c0_i32_1 : i32
    %5 = arith.andi %3, %4 : i1
    %c0 = arith.constant 0 : index
    %c0_2 = arith.constant 0 : index
    %6 = vector.load %arg3[%c0, %c0_2] : memref<2x32xf32, #tpu.memory_space<vmem>>, vector<2x32xf32>
    %7 = arith.extui %2 : i1 to i32
    %c0_i32_3 = arith.constant 0 : i32
    %8 = arith.cmpi ne, %7, %c0_i32_3 : i32
    scf.if %8 {
      %c0_25 = arith.constant 0 : index
      %c0_26 = arith.constant 0 : index
      %40 = vector.load %arg4[%c0_25, %c0_26] : memref<32x4xf32, #tpu.memory_space<vmem>>, vector<32x4xf32>
      %cst_27 = arith.constant dense<0.000000e+00> : vector<2x4xf32>
      %41 = tpu.matmul %6, %40, %cst_27 {dimension_numbers = #tpu.dot_dimension_numbers<[1], [0], [0], [1], [0, 0, 1, 1], [], []>} : vector<2x32xf32>, vector<32x4xf32>, vector<2x4xf32> -> vector<2x4xf32>
      %c0_28 = arith.constant 0 : index
      %c0_29 = arith.constant 0 : index
      %42 = vector.load %arg5[%c0_28, %c0_29] : memref<1x4xf32, #tpu.memory_space<vmem>>, vector<1x4xf32>
      %43 = vector.broadcast %42 : vector<1x4xf32> to vector<2x4xf32>
      %44 = arith.addf %41, %43 : vector<2x4xf32>
      %cst_30 = arith.constant dense<0xFF800000> : vector<2xf32>
      %45 = vector.multi_reduction <maximumf>, %44, %cst_30 [1] : vector<2x4xf32> to vector<2xf32>
      %46 = vector.shape_cast %45 : vector<2xf32> to vector<2x1xf32>
      %47 = vector.broadcast %46 : vector<2x1xf32> to vector<2x4xf32>
      %48 = arith.subf %44, %47 : vector<2x4xf32>
      %49 = math.exp %48 : vector<2x4xf32>
      %50 = tpu.iota {dimensions = array<i32: 1>} : vector<2x4xi32>
      %c0_i32_31 = arith.constant 0 : i32
      %51 = vector.broadcast %c0_i32_31 : i32 to vector<2x4xi32>
      %52 = vector.extract_strided_slice %49 {offsets = [0, 0], sizes = [2, 1], strides = [1, 1]} : vector<2x4xf32> to vector<2x1xf32>
      %53 = vector.broadcast %52 : vector<2x1xf32> to vector<2x4xf32>
      %54 = arith.cmpf ogt, %53, %49 : vector<2x4xf32>
      %55 = vector.broadcast %52 : vector<2x1xf32> to vector<2x4xf32>
      %56 = arith.cmpf oeq, %55, %49 : vector<2x4xf32>
      %c0_i32_32 = arith.constant 0 : i32
      %57 = vector.broadcast %c0_i32_32 : i32 to vector<2x4xi32>
      %58 = arith.cmpi sgt, %50, %57 : vector<2x4xi32>
      %59 = arith.andi %56, %58 : vector<2x4xi1>
      %60 = arith.ori %54, %59 : vector<2x4xi1>
      %61 = arith.extui %60 : vector<2x4xi1> to vector<2x4xi32>
      %62 = arith.addi %51, %61 : vector<2x4xi32>
      %63 = vector.extract_strided_slice %49 {offsets = [0, 1], sizes = [2, 1], strides = [1, 1]} : vector<2x4xf32> to vector<2x1xf32>
      %64 = vector.broadcast %63 : vector<2x1xf32> to vector<2x4xf32>
      %65 = arith.cmpf ogt, %64, %49 : vector<2x4xf32>
      %66 = vector.broadcast %63 : vector<2x1xf32> to vector<2x4xf32>
      %67 = arith.cmpf oeq, %66, %49 : vector<2x4xf32>
      %c1_i32 = arith.constant 1 : i32
      %68 = vector.broadcast %c1_i32 : i32 to vector<2x4xi32>
      %69 = arith.cmpi sgt, %50, %68 : vector<2x4xi32>
      %70 = arith.andi %67, %69 : vector<2x4xi1>
      %71 = arith.ori %65, %70 : vector<2x4xi1>
      %72 = arith.extui %71 : vector<2x4xi1> to vector<2x4xi32>
      %73 = arith.addi %62, %72 : vector<2x4xi32>
      %74 = vector.extract_strided_slice %49 {offsets = [0, 2], sizes = [2, 1], strides = [1, 1]} : vector<2x4xf32> to vector<2x1xf32>
      %75 = vector.broadcast %74 : vector<2x1xf32> to vector<2x4xf32>
      %76 = arith.cmpf ogt, %75, %49 : vector<2x4xf32>
      %77 = vector.broadcast %74 : vector<2x1xf32> to vector<2x4xf32>
      %78 = arith.cmpf oeq, %77, %49 : vector<2x4xf32>
      %c2_i32 = arith.constant 2 : i32
      %79 = vector.broadcast %c2_i32 : i32 to vector<2x4xi32>
      %80 = arith.cmpi sgt, %50, %79 : vector<2x4xi32>
      %81 = arith.andi %78, %80 : vector<2x4xi1>
      %82 = arith.ori %76, %81 : vector<2x4xi1>
      %83 = arith.extui %82 : vector<2x4xi1> to vector<2x4xi32>
      %84 = arith.addi %73, %83 : vector<2x4xi32>
      %85 = vector.extract_strided_slice %49 {offsets = [0, 3], sizes = [2, 1], strides = [1, 1]} : vector<2x4xf32> to vector<2x1xf32>
      %86 = vector.broadcast %85 : vector<2x1xf32> to vector<2x4xf32>
      %87 = arith.cmpf ogt, %86, %49 : vector<2x4xf32>
      %88 = vector.broadcast %85 : vector<2x1xf32> to vector<2x4xf32>
      %89 = arith.cmpf oeq, %88, %49 : vector<2x4xf32>
      %c3_i32_33 = arith.constant 3 : i32
      %90 = vector.broadcast %c3_i32_33 : i32 to vector<2x4xi32>
      %91 = arith.cmpi sgt, %50, %90 : vector<2x4xi32>
      %92 = arith.andi %89, %91 : vector<2x4xi1>
      %93 = arith.ori %87, %92 : vector<2x4xi1>
      %94 = arith.extui %93 : vector<2x4xi1> to vector<2x4xi32>
      %95 = arith.addi %84, %94 : vector<2x4xi32>
      %c2_i32_34 = arith.constant 2 : i32
      %96 = vector.broadcast %c2_i32_34 : i32 to vector<2x4xi32>
      %97 = arith.cmpi slt, %95, %96 : vector<2x4xi32>
      %98 = arith.extui %97 : vector<2x4xi1> to vector<2x4xi32>
      %99 = arith.sitofp %98 : vector<2x4xi32> to vector<2x4xf32>
      %100 = arith.mulf %49, %99 : vector<2x4xf32>
      %cst_35 = arith.constant dense<0.000000e+00> : vector<2xf32>
      %101 = vector.multi_reduction <add>, %100, %cst_35 [1] : vector<2x4xf32> to vector<2xf32>
      %102 = vector.shape_cast %101 : vector<2xf32> to vector<2x1xf32>
      %103 = vector.broadcast %102 : vector<2x1xf32> to vector<2x4xf32>
      %104 = arith.divf %100, %103 : vector<2x4xf32>
      %c0_36 = arith.constant 0 : index
      %c0_37 = arith.constant 0 : index
      %105 = vector.load %arg11[%c0_36, %c0_37] : memref<2x4xf32, #tpu.memory_space<vmem>>, vector<2x4xf32>
      tpu.vector_store %arg11[%c0_36, %c0_37], %104 {strides = array<i32>} : memref<2x4xf32, #tpu.memory_space<vmem>>, vector<2x4xf32>,
      %cst_38 = arith.constant 0.000000e+00 : f32
      %106 = vector.broadcast %cst_38 : f32 to vector<2x32xf32>
      %c0_39 = arith.constant 0 : index
      %c0_40 = arith.constant 0 : index
      %107 = vector.load %arg10[%c0_39, %c0_40] : memref<2x32xf32, #tpu.memory_space<vmem>>, vector<2x32xf32>
      tpu.vector_store %arg10[%c0_39, %c0_40], %106 {strides = array<i32>} : memref<2x32xf32, #tpu.memory_space<vmem>>, vector<2x32xf32>,
    } else {
    }
    %c0_4 = arith.constant 0 : index
    %c0_5 = arith.constant 0 : index
    %c0_6 = arith.constant 0 : index
    %9 = vector.load %arg6[%c0_4, %c0_5, %c0_6] : memref<1x32x16xf32, #tpu.memory_space<vmem>>, vector<1x32x16xf32>
    %10 = vector.shape_cast %9 : vector<1x32x16xf32> to vector<32x16xf32>
    %cst = arith.constant dense<0.000000e+00> : vector<2x16xf32>
    %11 = tpu.matmul %6, %10, %cst {dimension_numbers = #tpu.dot_dimension_numbers<[1], [0], [0], [1], [0, 0, 1, 1], [], []>} : vector<2x32xf32>, vector<32x16xf32>, vector<2x16xf32> -> vector<2x16xf32>
    %c0_7 = arith.constant 0 : index
    %c0_8 = arith.constant 0 : index
    %c0_9 = arith.constant 0 : index
    %12 = vector.load %arg8[%c0_7, %c0_8, %c0_9] : memref<1x32x16xf32, #tpu.memory_space<vmem>>, vector<1x32x16xf32>
    %13 = vector.shape_cast %12 : vector<1x32x16xf32> to vector<32x16xf32>
    %cst_10 = arith.constant dense<0.000000e+00> : vector<2x16xf32>
    %14 = tpu.matmul %6, %13, %cst_10 {dimension_numbers = #tpu.dot_dimension_numbers<[1], [0], [0], [1], [0, 0, 1, 1], [], []>} : vector<2x32xf32>, vector<32x16xf32>, vector<2x16xf32> -> vector<2x16xf32>
    %15 = arith.negf %11 : vector<2x16xf32>
    %16 = math.exp %15 : vector<2x16xf32>
    %cst_11 = arith.constant 1.000000e+00 : f32
    %17 = vector.broadcast %cst_11 : f32 to vector<2x16xf32>
    %18 = arith.addf %17, %16 : vector<2x16xf32>
    %19 = arith.divf %17, %18 : vector<2x16xf32>
    %20 = arith.mulf %11, %19 : vector<2x16xf32>
    %21 = arith.mulf %20, %14 : vector<2x16xf32>
    %c0_12 = arith.constant 0 : index
    %c0_13 = arith.constant 0 : index
    %c0_14 = arith.constant 0 : index
    %22 = vector.load %arg7[%c0_12, %c0_13, %c0_14] : memref<1x16x32xf32, #tpu.memory_space<vmem>>, vector<1x16x32xf32>
    %23 = vector.shape_cast %22 : vector<1x16x32xf32> to vector<16x32xf32>
    %cst_15 = arith.constant dense<0.000000e+00> : vector<2x32xf32>
    %24 = tpu.matmul %21, %23, %cst_15 {dimension_numbers = #tpu.dot_dimension_numbers<[1], [0], [0], [1], [0, 0, 1, 1], [], []>} : vector<2x16xf32>, vector<16x32xf32>, vector<2x32xf32> -> vector<2x32xf32>
    %25 = tpu.iota {dimensions = array<i32: 1>} : vector<2x4xi32>
    %26 = vector.broadcast %arg1 : i32 to vector<2x4xi32>
    %27 = arith.cmpi eq, %25, %26 : vector<2x4xi32>
    %c0_16 = arith.constant 0 : index
    %c0_17 = arith.constant 0 : index
    %28 = vector.load %arg11[%c0_16, %c0_17] : memref<2x4xf32, #tpu.memory_space<vmem>>, vector<2x4xf32>
    %cst_18 = arith.constant 0.000000e+00 : f32
    %29 = vector.broadcast %cst_18 : f32 to vector<2x4xf32>
    %30 = arith.select %27, %28, %29 : vector<2x4xi1>, vector<2x4xf32>
    %cst_19 = arith.constant dense<0.000000e+00> : vector<2xf32>
    %31 = vector.multi_reduction <add>, %30, %cst_19 [1] : vector<2x4xf32> to vector<2xf32>
    %32 = vector.shape_cast %31 : vector<2xf32> to vector<2x1xf32>
    %c0_20 = arith.constant 0 : index
    %c0_21 = arith.constant 0 : index
    %33 = vector.load %arg10[%c0_20, %c0_21] : memref<2x32xf32, #tpu.memory_space<vmem>>, vector<2x32xf32>
    %34 = vector.broadcast %32 : vector<2x1xf32> to vector<2x32xf32>
    %35 = arith.mulf %34, %24 : vector<2x32xf32>
    %36 = arith.addf %33, %35 : vector<2x32xf32>
    %c0_22 = arith.constant 0 : index
    %c0_23 = arith.constant 0 : index
    %37 = vector.load %arg10[%c0_22, %c0_23] : memref<2x32xf32, #tpu.memory_space<vmem>>, vector<2x32xf32>
    tpu.vector_store %arg10[%c0_22, %c0_23], %36 {strides = array<i32>} : memref<2x32xf32, #tpu.memory_space<vmem>>, vector<2x32xf32>,
    %38 = arith.extui %5 : i1 to i32
    %c0_i32_24 = arith.constant 0 : i32
    %39 = arith.cmpi ne, %38, %c0_i32_24 : i32
    scf.if %39 {
      %c0_25 = arith.constant 0 : index
      %c0_26 = arith.constant 0 : index
      %40 = vector.load %arg10[%c0_25, %c0_26] : memref<2x32xf32, #tpu.memory_space<vmem>>, vector<2x32xf32>
      %c0_27 = arith.constant 0 : index
      %c0_28 = arith.constant 0 : index
      %41 = vector.load %arg9[%c0_27, %c0_28] : memref<2x32xf32, #tpu.memory_space<vmem>>, vector<2x32xf32>
      tpu.vector_store %arg9[%c0_27, %c0_28], %40 {strides = array<i32>} : memref<2x32xf32, #tpu.memory_space<vmem>>, vector<2x32xf32>,
    } else {
    }
    return
  }
  func.func @transform_0(%arg0: i32, %arg1: i32, %arg2: i32) -> (i32, i32) {
    %c0_i32 = arith.constant 0 : i32
    %c0_i32_0 = arith.constant 0 : i32
    return %arg0, %c0_i32 : i32, i32
  }
  func.func @transform_1(%arg0: i32, %arg1: i32, %arg2: i32) -> (i32, i32) {
    %c0_i32 = arith.constant 0 : i32
    %c0_i32_0 = arith.constant 0 : i32
    %c0_i32_1 = arith.constant 0 : i32
    return %c0_i32, %c0_i32_0 : i32, i32
  }
  func.func @transform_2(%arg0: i32, %arg1: i32, %arg2: i32) -> (i32, i32) {
    %c0_i32 = arith.constant 0 : i32
    %c0_i32_0 = arith.constant 0 : i32
    %c0_i32_1 = arith.constant 0 : i32
    return %c0_i32, %c0_i32_0 : i32, i32
  }
  func.func @transform_3(%arg0: i32, %arg1: i32, %arg2: i32) -> (i32, i32, i32) {
    %c0_i32 = arith.constant 0 : i32
    %c0_i32_0 = arith.constant 0 : i32
    return %arg1, %c0_i32, %arg2 : i32, i32, i32
  }
  func.func @transform_4(%arg0: i32, %arg1: i32, %arg2: i32) -> (i32, i32, i32) {
    %c0_i32 = arith.constant 0 : i32
    %c0_i32_0 = arith.constant 0 : i32
    return %arg1, %arg2, %c0_i32 : i32, i32, i32
  }
  func.func @transform_5(%arg0: i32, %arg1: i32, %arg2: i32) -> (i32, i32, i32) {
    %c0_i32 = arith.constant 0 : i32
    %c0_i32_0 = arith.constant 0 : i32
    return %arg1, %c0_i32, %arg2 : i32, i32, i32
  }
  func.func @transform_6(%arg0: i32, %arg1: i32, %arg2: i32) -> (i32, i32) {
    %c0_i32 = arith.constant 0 : i32
    %c0_i32_0 = arith.constant 0 : i32
    return %arg0, %c0_i32 : i32, i32
  }
}

</mosaic_0001>

<llo_original>
// kernel: tpu_custom_call.1
$region0: #{tpu_custom_call.1}
  #allocation0 [shape = 'u32[]', space=smem, size = 0x4, offset = 0x4, fixed_abs, tag = 'smem constant byte address 0x4 - core index']
  #allocation1 [shape = 'u32[72,128]{1,0:T(1,128)}', space=vmem, size = 0x9000, scoped, tag = 'internal scratch']
  #allocation2 [shape = 'f32[2,32]{1,0:T(2,128)}', space=vmem, size = 0x400, scoped, tag = 'scratch operand']
  #allocation3 [shape = 'f32[2,4]{1,0:T(2,128)}', space=vmem, size = 0x400, scoped, tag = 'scratch operand']
  %s0 = inlined_call_operand.vmem [shape: f32[2,32], index: 0, kind: input, shape index: {}]
  %s1 = inlined_call_operand.vmem [shape: f32[32,4], index: 1, kind: input, shape index: {}]
  %s2 = inlined_call_operand.vmem [shape: f32[1,4], index: 2, kind: input, shape index: {}]
  %s3 = inlined_call_operand.vmem [shape: f32[4,32,16], index: 3, kind: input, shape index: {}]
  %s4 = inlined_call_operand.vmem [shape: f32[4,16,32], index: 4, kind: input, shape index: {}]
  %s5 = inlined_call_operand.vmem [shape: f32[4,32,16], index: 5, kind: input, shape index: {}]
  %s6 = inlined_call_operand.hbm [shape: f32[2,32], index: 6, kind: output, shape index: {}]
  %s7 = sld [smem:[#allocation0]]
  $region65: #{tpu_custom_call.1} parent=0
    _
  %s9 = ssub.s32 1, %s7
  %s10 = scalar_select 0, %s9, %s7
  $region1: #{tpu_custom_call.1} parent=0
    #allocation4 [shape = 'u8[1024]{0}', space=vmem, size = 0x400, scoped, tag = 'output window, operand 0, single buffered']
    #allocation5 [shape = 's32[2]{0}', space=sflag, size = 0x8, scoped, tag = 'scoped memory for tpu_custom_call.1']
    %11 = vsyncpa [#allocation5], 0
    loop: start=0, step=1, limit=6
    $region2: #{tpu_custom_call.1} parent=1 // loop_pre_header
      _
    $region3: #{tpu_custom_call.1} parent=1 // loop_header
      %s13 = sphi 0, %s17
      %p14 = scmp.ge.s32.totalorder %s13, 6
      %s20 = sphi 0, %s39
      %s21 = sphi 0, %s35
      %s22 = sphi 0, %s31
      %s23 = sphi 0, %s20
      %s24 = sphi 0, %s21
      %s25 = sphi 0, %s22
      %s26 = sphi 0, %s23
      %s27 = sphi 0, %s24
      %s28 = sphi 0, %s25
      %s42 = sphi 0, %s44
      %s45 = sphi 0, %s42
      %s46 = sphi 0, %s45
      %s62 = sphi 0, %s46
      %s66 = sphi 0, %s66
      %s68 = sphi 0, %s66
      %s69 = sphi 0, %s68
      %s83 = sphi 0, %s69
      %s87 = sphi 0, %s87
      %s89 = sphi 0, %s87
      %s90 = sphi 0, %s89
      %s104 = sphi 0, %s90
      %s112 = sphi 0, %s114
      %s115 = sphi 0, %s112
      %s116 = sphi 0, %s115
      %s132 = sphi 0, %s116
      %s140 = sphi 0, %s142
      %s143 = sphi 0, %s140
      %s144 = sphi 0, %s143
      %s160 = sphi 0, %s144
      %s168 = sphi 0, %s170
      %s171 = sphi 0, %s168
      %s172 = sphi 0, %s171
      %s188 = sphi 0, %s172
      %s194 = sphi 0, %s196
      %s197 = sphi 0, %s194
      %s198 = sphi 0, %s197
      %s214 = sphi 0, %s198
    $region4: #{tpu_custom_call.1} parent=1 // loop_header_branch
      %16 = sbr.rel (%p14) target = $region8
    $region5: #{tpu_custom_call.1} parent=1 // loop_body
      %s18 = ssub.s32 %s13, 1
      %s19 = ssub.s32 %s13, 2
      %s29 = sadd.s32 1, %s22
      %p30 = scmp.ge.s32.totalorder %s29, 1
      %s31 = scalar_select %p30, 0, %s29
      %s32 = sadd.s32 1, %s21
      %s33 = scalar_select %p30, %s32, %s21
      %p34 = scmp.ge.s32.totalorder %s33, 4
      %s35 = scalar_select %p34, 0, %s33
      %s36 = sadd.s32 1, %s20
      %s37 = scalar_select %p34, %s36, %s20
      %p38 = scmp.ge.s32.totalorder %s37, 1
      %s39 = scalar_select %p38, 0, %s37
      %s40 = ssub.s32 %s20, %s39
      %p41 = scmp.eq.s32.totalorder %s40, 0
      %s43 = sadd.s32 %s42, 1
      %s44 = scalar_select %p41, %s42, %s43
      %p47 = pneg %p41
      %p48 = scmp.eq.s32.totalorder %s13, 3
      %p49 = por %p47, %p48
      %p50 = scmp.ne.s32.totalorder %s42, %s45
      %p51 = scmp.eq.s32.totalorder %s13, 0
      %p52 = por %p50, %p51
      %p53 = scmp.ne.s32.totalorder %s42, %s45
      %p54 = scmp.eq.s32.totalorder %s18, 3
      %p55 = por %p53, %p54
      %p56 = scmp.ne.s32.totalorder %s45, %s46
      %p57 = scmp.eq.s32.totalorder %s18, 0
      %p58 = por %p56, %p57
      %p59 = scmp.ne.s32.totalorder %s45, %s46
      %p60 = scmp.eq.s32.totalorder %s19, 3
      %p61 = por %p59, %p60
      %p63 = scmp.ne.s32.totalorder %s46, %s62
      %p64 = scmp.eq.s32.totalorder %s19, 0
      %p65 = por %p63, %p64
      %s67 = sadd.s32 %s66, 1
      %p70 = scmp.eq.s32.totalorder %s13, 3
      %p71 = scmp.ne.s32.totalorder %s66, %s68
      %p72 = scmp.eq.s32.totalorder %s13, 0
      %p73 = por %p71, %p72
      %p74 = scmp.ne.s32.totalorder %s66, %s68
      %p75 = scmp.eq.s32.totalorder %s18, 3
      %p76 = por %p74, %p75
      %p77 = scmp.ne.s32.totalorder %s68, %s69
      %p78 = scmp.eq.s32.totalorder %s18, 0
      %p79 = por %p77, %p78
      %p80 = scmp.ne.s32.totalorder %s68, %s69
      %p81 = scmp.eq.s32.totalorder %s19, 3
      %p82 = por %p80, %p81
      %p84 = scmp.ne.s32.totalorder %s69, %s83
      %p85 = scmp.eq.s32.totalorder %s19, 0
      %p86 = por %p84, %p85
      %s88 = sadd.s32 %s87, 1
      %p91 = scmp.eq.s32.totalorder %s13, 3
      %p92 = scmp.ne.s32.totalorder %s87, %s89
      %p93 = scmp.eq.s32.totalorder %s13, 0
      %p94 = por %p92, %p93
      %p95 = scmp.ne.s32.totalorder %s87, %s89
      %p96 = scmp.eq.s32.totalorder %s18, 3
      %p97 = por %p95, %p96
      %p98 = scmp.ne.s32.totalorder %s89, %s90
      %p99 = scmp.eq.s32.totalorder %s18, 0
      %p100 = por %p98, %p99
      %p101 = scmp.ne.s32.totalorder %s89, %s90
      %p102 = scmp.eq.s32.totalorder %s19, 3
      %p103 = por %p101, %p102
      %p105 = scmp.ne.s32.totalorder %s90, %s104
      %p106 = scmp.eq.s32.totalorder %s19, 0
      %p107 = por %p105, %p106
      %s108 = ssub.s32 %s21, %s35
      %s109 = ssub.s32 %s22, %s31
      %s110 = sor.u32 %s108, %s109
      %p111 = scmp.eq.s32.totalorder %s110, 0
      %s113 = sadd.s32 %s112, 1
      %s114 = scalar_select %p111, %s112, %s113
      %p117 = pneg %p111
      %p118 = scmp.eq.s32.totalorder %s13, 3
      %p119 = por %p117, %p118
      %p120 = scmp.ne.s32.totalorder %s112, %s115
      %p121 = scmp.eq.s32.totalorder %s13, 0
      %p122 = por %p120, %p121
      %p123 = scmp.ne.s32.totalorder %s112, %s115
      %p124 = scmp.eq.s32.totalorder %s18, 3
      %p125 = por %p123, %p124
      %p126 = scmp.ne.s32.totalorder %s115, %s116
      %p127 = scmp.eq.s32.totalorder %s18, 0
      %p128 = por %p126, %p127
      %p129 = scmp.ne.s32.totalorder %s115, %s116
      %p130 = scmp.eq.s32.totalorder %s19, 3
      %p131 = por %p129, %p130
      %p133 = scmp.ne.s32.totalorder %s116, %s132
      %p134 = scmp.eq.s32.totalorder %s19, 0
      %p135 = por %p133, %p134
      %s136 = ssub.s32 %s21, %s35
      %s137 = ssub.s32 %s22, %s31
      %s138 = sor.u32 %s136, %s137
      %p139 = scmp.eq.s32.totalorder %s138, 0
      %s141 = sadd.s32 %s140, 1
      %s142 = scalar_select %p139, %s140, %s141
      %p145 = pneg %p139
      %p146 = scmp.eq.s32.totalorder %s13, 3
      %p147 = por %p145, %p146
      %p148 = scmp.ne.s32.totalorder %s140, %s143
      %p149 = scmp.eq.s32.totalorder %s13, 0
      %p150 = por %p148, %p149
      %p151 = scmp.ne.s32.totalorder %s140, %s143
      %p152 = scmp.eq.s32.totalorder %s18, 3
      %p153 = por %p151, %p152
      %p154 = scmp.ne.s32.totalorder %s143, %s144
      %p155 = scmp.eq.s32.totalorder %s18, 0
      %p156 = por %p154, %p155
      %p157 = scmp.ne.s32.totalorder %s143, %s144
      %p158 = scmp.eq.s32.totalorder %s19, 3
      %p159 = por %p157, %p158
      %p161 = scmp.ne.s32.totalorder %s144, %s160
      %p162 = scmp.eq.s32.totalorder %s19, 0
      %p163 = por %p161, %p162
      %s164 = ssub.s32 %s21, %s35
      %s165 = ssub.s32 %s22, %s31
      %s166 = sor.u32 %s164, %s165
      %p167 = scmp.eq.s32.totalorder %s166, 0
      %s169 = sadd.s32 %s168, 1
      %s170 = scalar_select %p167, %s168, %s169
      %p173 = pneg %p167
      %p174 = scmp.eq.s32.totalorder %s13, 3
      %p175 = por %p173, %p174
      %p176 = scmp.ne.s32.totalorder %s168, %s171
      %p177 = scmp.eq.s32.totalorder %s13, 0
      %p178 = por %p176, %p177
      %p179 = scmp.ne.s32.totalorder %s168, %s171
      %p180 = scmp.eq.s32.totalorder %s18, 3
      %p181 = por %p179, %p180
      %p182 = scmp.ne.s32.totalorder %s171, %s172
      %p183 = scmp.eq.s32.totalorder %s18, 0
      %p184 = por %p182, %p183
      %p185 = scmp.ne.s32.totalorder %s171, %s172
      %p186 = scmp.eq.s32.totalorder %s19, 3
      %p187 = por %p185, %p186
      %p189 = scmp.ne.s32.totalorder %s172, %s188
      %p190 = scmp.eq.s32.totalorder %s19, 0
      %p191 = por %p189, %p190
      %s192 = ssub.s32 %s20, %s39
      %p193 = scmp.eq.s32.totalorder %s192, 0
      %s195 = sadd.s32 %s194, 1
      %s196 = scalar_select %p193, %s194, %s195
      %p199 = pneg %p193
      %p200 = scmp.eq.s32.totalorder %s13, 3
      %p201 = por %p199, %p200
      %p202 = scmp.ne.s32.totalorder %s194, %s197
      %p203 = scmp.eq.s32.totalorder %s13, 0
      %p204 = por %p202, %p203
      %p205 = scmp.ne.s32.totalorder %s194, %s197
      %p206 = scmp.eq.s32.totalorder %s18, 3
      %p207 = por %p205, %p206
      %p208 = scmp.ne.s32.totalorder %s197, %s198
      %p209 = scmp.eq.s32.totalorder %s18, 0
      %p210 = por %p208, %p209
      %p211 = scmp.ne.s32.totalorder %s197, %s198
      %p212 = scmp.eq.s32.totalorder %s19, 3
      %p213 = por %p211, %p212
      %p215 = scmp.ne.s32.totalorder %s198, %s214
      %p216 = scmp.eq.s32.totalorder %s19, 0
      %p217 = por %p215, %p216
      %p218 = scmp.le.s32.totalorder 1, %s13
      %p219 = scmp.lt.s32.totalorder %s13, 5
      %p220 = pnand %p218, %p219
      %p221 = pneg %p220
      // Predicated region
      $region9: #{tpu_custom_call.1} parent=5 // pred_check
        _
      $region10: #{tpu_custom_call.1} parent=5 // pred_check_branch
        %223 = sbr.rel (%p220) target = $region12
      $region11: #{tpu_custom_call.1} parent=5 // pred_region
        %s224 = ssub.s32 %s13, 1
        // Predicated region
        $region13: #{tpu_custom_call.1} parent=11 // pred_check
          %p225 = pneg %p58
        $region14: #{tpu_custom_call.1} parent=11 // pred_check_branch
          %227 = sbr.rel (%p225) target = $region16
        $region15: #{tpu_custom_call.1} parent=11 // pred_region
          %p228 = scmp.lt.s32.totalorder %s23, 0
          %s229 = scalar_select %p228, %s23, 0
          %s230 = smul.addr %s229, 2
          %s231 = scalar_lea.vmem %s0, %s230
        $region16: #{tpu_custom_call.1} parent=11 // pred_fallthru
          _
        // Predicated region
        $region17: #{tpu_custom_call.1} parent=11 // pred_check
          %p232 = pneg %p79
        $region18: #{tpu_custom_call.1} parent=11 // pred_check_branch
          %234 = sbr.rel (%p232) target = $region20
        $region19: #{tpu_custom_call.1} parent=11 // pred_region
          _
        $region20: #{tpu_custom_call.1} parent=11 // pred_fallthru
          _
        // Predicated region
        $region21: #{tpu_custom_call.1} parent=11 // pred_check
          %p235 = pneg %p100
        $region22: #{tpu_custom_call.1} parent=11 // pred_check_branch
          %237 = sbr.rel (%p235) target = $region24
        $region23: #{tpu_custom_call.1} parent=11 // pred_region
          _
        $region24: #{tpu_custom_call.1} parent=11 // pred_fallthru
          _
      $region12: #{tpu_custom_call.1} parent=5 // pred_fallthru
        _
      %p238 = scmp.lt.s32.totalorder %s13, 4
      // Predicated region
      $region25: #{tpu_custom_call.1} parent=5 // pred_check
        %p239 = pneg %p238
      $region26: #{tpu_custom_call.1} parent=5 // pred_check_branch
        %241 = sbr.rel (%p239) target = $region28
      $region27: #{tpu_custom_call.1} parent=5 // pred_region
        // Predicated region
        $region29: #{tpu_custom_call.1} parent=27 // pred_check
          %p242 = pneg %p122
        $region30: #{tpu_custom_call.1} parent=27 // pred_check_branch
          %244 = sbr.rel (%p242) target = $region32
        $region31: #{tpu_custom_call.1} parent=27 // pred_region
          %p245 = scmp.lt.s32.totalorder %s21, 3
          %s246 = scalar_select %p245, %s21, 3
          %p247 = scmp.lt.s32.totalorder %s22, 0
          %s248 = scalar_select %p247, %s22, 0
          %s249 = smul.addr %s246, 4
          %s250 = sadd.s32 %s248, %s249
          %s251 = smul.addr %s250, 8
          %s252 = scalar_lea.vmem %s3, %s251
        $region32: #{tpu_custom_call.1} parent=27 // pred_fallthru
          _
        // Predicated region
        $region33: #{tpu_custom_call.1} parent=27 // pred_check
          %p253 = pneg %p150
        $region34: #{tpu_custom_call.1} parent=27 // pred_check_branch
          %255 = sbr.rel (%p253) target = $region36
        $region35: #{tpu_custom_call.1} parent=27 // pred_region
          %s256 = smul.u32 2, %s22
          %p257 = scmp.lt.s32.totalorder %s21, 3
          %s258 = scalar_select %p257, %s21, 3
          %p259 = scmp.lt.s32.totalorder %s256, 1
          %s260 = scalar_select %p259, %s256, 1
          %s261 = smul.addr %s258, 2
          %s262 = sadd.s32 %s260, %s261
          %s263 = smul.addr %s262, 8
          %s264 = scalar_lea.vmem %s4, %s263
          %s265 = smul.u32 2, %s22
        $region36: #{tpu_custom_call.1} parent=27 // pred_fallthru
          _
        // Predicated region
        $region37: #{tpu_custom_call.1} parent=27 // pred_check
          %p266 = pneg %p178
        $region38: #{tpu_custom_call.1} parent=27 // pred_check_branch
          %268 = sbr.rel (%p266) target = $region40
        $region39: #{tpu_custom_call.1} parent=27 // pred_region
          %p269 = scmp.lt.s32.totalorder %s21, 3
          %s270 = scalar_select %p269, %s21, 3
          %p271 = scmp.lt.s32.totalorder %s22, 0
          %s272 = scalar_select %p271, %s22, 0
          %s273 = smul.addr %s270, 4
          %s274 = sadd.s32 %s272, %s273
          %s275 = smul.addr %s274, 8
          %s276 = scalar_lea.vmem %s5, %s275
        $region40: #{tpu_custom_call.1} parent=27 // pred_fallthru
          _
      $region28: #{tpu_custom_call.1} parent=5 // pred_fallthru
        _
      %p277 = scmp.le.s32.totalorder 1, %s13
      %p278 = scmp.lt.s32.totalorder %s13, 5
      %p279 = pnand %p277, %p278
      %p280 = pneg %p279
      // Predicated region
      $region41: #{tpu_custom_call.1} parent=5 // pred_check
        _
      $region42: #{tpu_custom_call.1} parent=5 // pred_check_branch
        %282 = sbr.rel (%p279) target = $region44
      $region43: #{tpu_custom_call.1} parent=5 // pred_region
        %s283 = ssub.s32 %s13, 1
        %p284 = scmp.lt.s32.totalorder %s23, 0
        %s285 = scalar_select %p284, %s23, 0
        %s286 = smul.addr %s285, 2
        %s287 = scalar_lea.vmem %s0, %s286
        %p288 = pneg %p58
        %p289 = pneg %p55
        %p290 = pneg %p79
        %p291 = pneg %p76
        %p292 = pneg %p100
        %p293 = pneg %p97
        %p294 = scmp.lt.s32.totalorder %s24, 3
        %s295 = scalar_select %p294, %s24, 3
        %p296 = scmp.lt.s32.totalorder %s25, 0
        %s297 = scalar_select %p296, %s25, 0
        %s298 = smul.addr %s295, 4
        %s299 = sadd.s32 %s297, %s298
        %s300 = smul.addr %s299, 8
        %s301 = scalar_lea.vmem %s3, %s300
        %p302 = pneg %p128
        %p303 = pneg %p125
        %s304 = smul.u32 2, %s25
        %p305 = scmp.lt.s32.totalorder %s24, 3
        %s306 = scalar_select %p305, %s24, 3
        %p307 = scmp.lt.s32.totalorder %s304, 1
        %s308 = scalar_select %p307, %s304, 1
        %s309 = smul.addr %s306, 2
        %s310 = sadd.s32 %s308, %s309
        %s311 = smul.addr %s310, 8
        %s312 = scalar_lea.vmem %s4, %s311
        %p313 = pneg %p156
        %p314 = pneg %p153
        %p315 = scmp.lt.s32.totalorder %s24, 3
        %s316 = scalar_select %p315, %s24, 3
        %p317 = scmp.lt.s32.totalorder %s25, 0
        %s318 = scalar_select %p317, %s25, 0
        %s319 = smul.addr %s316, 4
        %s320 = sadd.s32 %s318, %s319
        %s321 = smul.addr %s320, 8
        %s322 = scalar_lea.vmem %s5, %s321
        %p323 = pneg %p184
        %p324 = pneg %p181
        %p325 = pneg %p210
        %p326 = pneg %p207
        %p327 = scmp.lt.s32.totalorder %s23, 0
        %s328 = scalar_select %p327, %s23, 0
        %s329 = smul.addr %s328, 2
        %s330 = scalar_lea.vmem %s0, %s329
        %p331 = scmp.lt.s32.totalorder %s24, 3
        %s332 = scalar_select %p331, %s24, 3
        %p333 = scmp.lt.s32.totalorder %s25, 0
        %s334 = scalar_select %p333, %s25, 0
        %s335 = smul.addr %s332, 4
        %s336 = sadd.s32 %s334, %s335
        %s337 = smul.addr %s336, 8
        %s338 = scalar_lea.vmem %s3, %s337
        %s339 = smul.u32 2, %s25
        %p340 = scmp.lt.s32.totalorder %s24, 3
        %s341 = scalar_select %p340, %s24, 3
        %p342 = scmp.lt.s32.totalorder %s339, 1
        %s343 = scalar_select %p342, %s339, 1
        %s344 = smul.addr %s341, 2
        %s345 = sadd.s32 %s343, %s344
        %s346 = smul.addr %s345, 8
        %s347 = scalar_lea.vmem %s4, %s346
        %s348 = smul.u32 2, %s25
        %p349 = scmp.lt.s32.totalorder %s24, 3
        %s350 = scalar_select %p349, %s24, 3
        %p351 = scmp.lt.s32.totalorder %s25, 0
        %s352 = scalar_select %p351, %s25, 0
        %s353 = smul.addr %s350, 4
        %s354 = sadd.s32 %s352, %s353
        %s355 = smul.addr %s354, 8
        %s356 = scalar_lea.vmem %s5, %s355
        %p357 = scmp.eq.s32.totalorder %s24, 0
        %p358 = scmp.eq.s32.totalorder %s25, 0
        %p359 = pnand %p357, %p358
        %p360 = pneg %p359
        %p361 = scmp.eq.s32.totalorder %s24, 3
        %p362 = pnand %p361, %p358
        %p363 = pneg %p362
        %v364 = vld [vmem:[%s330] sm:$0x3]
        // Predicated region
        $region45: #{tpu_custom_call.1} parent=43 // pred_check
          _
        $region46: #{tpu_custom_call.1} parent=43 // pred_check_branch
          %366 = sbr.rel (%p359) target = $region48
        $region47: #{tpu_custom_call.1} parent=43 // pred_region
          %v367 = vld [vmem:[%s1] sm:$0xff]
          %v368 = vld [vmem:[%s1 + $0x8] sm:$0xff]
          %v369 = vld [vmem:[%s1 + $0x10] sm:$0xff]
          %v370 = vld [vmem:[%s1 + $0x18] sm:$0xff]
          %v371 = vld [vmem:[%s2] sm:$0x1]
          %v373 = vperm.slane %v371, 0
          %vm375 = vcmask 261120
          %v377 = vsel %vm375, %v364, 0
          %379 = vmatpush.msra.mxu0 0.0
          %380 = vmatpush.msra.mxu0 0.0
          %381 = vmatpush.msra.mxu0 0.0
          %382 = vmatpush.msra.mxu0 0.0
          %383 = vmatpush.msra.mxu0 0.0
          %384 = vmatpush.msra.mxu0 0.0
          %385 = vmatpush.msra.mxu0 0.0
          %386 = vmatpush.msra.mxu0 0.0
          %387 = vmatpush.msra.mxu0 0.0
          %388 = vmatpush.msra.mxu0 0.0
          %389 = vmatpush.msra.mxu0 0.0
          %390 = vmatpush.msra.mxu0 0.0
          %391 = vmatpush.msra.mxu0 %v370
          %392 = vmatpush.msra.mxu0 %v369
          %393 = vmatpush.msra.mxu0 %v368
          %394 = vmatpush.msra.mxu0 %v367
          %395 = vmatmul.f32.gmra.mxu0 %v377
          %v396 = vpop.f32.mrf.mxu0
          %v397 = vadd.f32 %v373, %v396
          %398 = vdwg.mxu0
          %vm399 = vcmask 25600
          %v400 = vsel %vm399, %v397, -inf
          %401 = vmax.xlane.f32.xlu0 %v400
          %v402 = vpop.xlane.xlu0 %401
          %v403 = vsub.f32 %v397, %v402
          %v404 = vmul.f32 %v403, 1.442695
          %v405 = vpow.pop %v404
          %v406 = vlaneseq
          %v407 = vand.u32 %v406, 127
          %409 = vset.pattern.permute.xlu0 0
          %410 = vperm.xlu0 %409, %v405
          %v411 = vpop.permute.xlu0 %410
          %vm413 = vcmp.gt.f32.partialorder %v411, %v405
          %vm414 = vcmp.eq.f32.partialorder %v411, %v405
          %vm415 = vcmp.gt.s32.totalorder %v407, 0
          %vm416 = vmand %vm414, %vm415
          %vm417 = vmor %vm413, %vm416
          %v418 = vsel %vm417, 1, 0
          %419 = vset.pattern.permute.xlu0 1
          %420 = vperm.xlu0 %419, %v405
          %v421 = vpop.permute.xlu0 %420
          %vm423 = vcmp.gt.f32.partialorder %v421, %v405
          %vm424 = vcmp.eq.f32.partialorder %v421, %v405
          %vm425 = vcmp.gt.s32.totalorder %v407, 1
          %vm426 = vmand %vm424, %vm425
          %vm427 = vmor %vm423, %vm426
          %v428 = vsel %vm427, 1, 0
          %v429 = vadd.s32 %v418, %v428
          %430 = vset.pattern.permute.xlu0 2
          %431 = vperm.xlu0 %430, %v405
          %v432 = vpop.permute.xlu0 %431
          %vm434 = vcmp.gt.f32.partialorder %v432, %v405
          %vm435 = vcmp.eq.f32.partialorder %v432, %v405
          %vm436 = vcmp.gt.s32.totalorder %v407, 2
          %vm437 = vmand %vm435, %vm436
          %vm438 = vmor %vm434, %vm437
          %v439 = vsel %vm438, 1, 0
          %v440 = vadd.s32 %v429, %v439
          %441 = vset.pattern.permute.xlu0 3
          %442 = vperm.xlu0 %441, %v405
          %v443 = vpop.permute.xlu0 %442
          %vm445 = vcmp.gt.f32.partialorder %v443, %v405
          %vm446 = vcmp.eq.f32.partialorder %v443, %v405
          %vm447 = vcmp.gt.s32.totalorder %v407, 3
          %vm448 = vmand %vm446, %vm447
          %vm449 = vmor %vm445, %vm448
          %v450 = vsel %vm449, 1, 0
          %v451 = vadd.s32 %v440, %v450
          %vm452 = vcmp.lt.s32.totalorder %v451, 2
          %v453 = vsel %vm452, 1, 0
          %v454 = vcvt.s32.f32 %v453
          %v455 = vmul.f32 %v405, %v454
          %v456 = vsel %vm399, %v455, 0.0
          %457 = vadd.xlane.f32.xlu0 %v456
          %v458 = vpop.xlane.xlu0 %457
          %v459 = vrcp.pop %v458
          %v460 = vmul.f32 %v458, %v459
          %v461 = vsub.f32 1.0, %v460
          %v462 = vmul.f32 %v459, %v461
          %v463 = vadd.f32 %v459, %v462
          %vm464 = vweird.f32 %v458
          %vm465 = vweird.f32 %v459
          %vm466 = vmor %vm464, %vm465
          %v467 = vsel %vm466, %v459, %v463
          %v468 = vand.u32 2147483647, %v458
          %vm469 = vcmp.eq.f32.partialorder %v468, 8.507059e+37
          %v470 = vand.u32 %v458, 2147483648
          %v471 = vor.u32 1.1754944e-38, %v470
          %v472 = vsel %vm469, %v471, %v467
          %v473 = vmul.f32 %v455, %v472
          %474 = vst.msk [vmem:[#allocation3] sm:$0x3] %vm399, %v473
          %vm475 = vcmask 254976
          %476 = vst.msk [vmem:[#allocation2] sm:$0x3] %vm475, 0.0
        $region48: #{tpu_custom_call.1} parent=43 // pred_fallthru
          _
        %v477 = vld [vmem:[%s338] sm:$0xff]
        %v478 = vld [vmem:[%s338 + $0x8] sm:$0xff]
        %v479 = vld [vmem:[%s338 + $0x10] sm:$0xff]
        %v480 = vld [vmem:[%s338 + $0x18] sm:$0xff]
        %vm481 = vcmask 261120
        %v483 = vsel %vm481, %v364, 0
        %485 = vmatpush.msra.mxu0 0.0
        %486 = vmatpush.msra.mxu0 0.0
        %487 = vmatpush.msra.mxu0 0.0
        %488 = vmatpush.msra.mxu0 0.0
        %489 = vmatpush.msra.mxu0 0.0
        %490 = vmatpush.msra.mxu0 0.0
        %491 = vmatpush.msra.mxu0 0.0
        %492 = vmatpush.msra.mxu0 0.0
        %493 = vmatpush.msra.mxu0 0.0
        %494 = vmatpush.msra.mxu0 0.0
        %495 = vmatpush.msra.mxu0 0.0
        %496 = vmatpush.msra.mxu0 0.0
        %497 = vmatpush.msra.mxu0 %v480
        %498 = vmatpush.msra.mxu0 %v479
        %499 = vmatpush.msra.mxu0 %v478
        %500 = vmatpush.msra.mxu0 %v477
        %501 = vmatmul.f32.gmra.mxu0 %v483
        %v502 = vpop.f32.mrf.mxu0
        %v503 = vadd.f32 0.0, %v502
        %504 = vdwg.mxu0
        %v505 = vld [vmem:[%s356] sm:$0xff]
        %v506 = vld [vmem:[%s356 + $0x8] sm:$0xff]
        %v507 = vld [vmem:[%s356 + $0x10] sm:$0xff]
        %v508 = vld [vmem:[%s356 + $0x18] sm:$0xff]
        %509 = vmatpush.msra.mxu0 0.0
        %510 = vmatpush.msra.mxu0 0.0
        %511 = vmatpush.msra.mxu0 0.0
        %512 = vmatpush.msra.mxu0 0.0
        %513 = vmatpush.msra.mxu0 0.0
        %514 = vmatpush.msra.mxu0 0.0
        %515 = vmatpush.msra.mxu0 0.0
        %516 = vmatpush.msra.mxu0 0.0
        %517 = vmatpush.msra.mxu0 0.0
        %518 = vmatpush.msra.mxu0 0.0
        %519 = vmatpush.msra.mxu0 0.0
        %520 = vmatpush.msra.mxu0 0.0
        %521 = vmatpush.msra.mxu0 %v508
        %522 = vmatpush.msra.mxu0 %v507
        %523 = vmatpush.msra.mxu0 %v506
        %524 = vmatpush.msra.mxu0 %v505
        %525 = vmatmul.f32.gmra.mxu0 %v483
        %v526 = vpop.f32.mrf.mxu0
        %v527 = vadd.f32 0.0, %v526
        %528 = vdwg.mxu0
        %v529 = vxor.u32 %v503, 2147483648
        %v530 = vmul.f32 %v529, 1.442695
        %v531 = vpow.pop %v530
        %v532 = vadd.f32 %v531, 1.0
        %v533 = vrcp.pop %v532
        %v534 = vmul.f32 %v532, %v533
        %v535 = vsub.f32 1.0, %v534
        %v536 = vmul.f32 %v533, %v535
        %v537 = vadd.f32 %v533, %v536
        %vm538 = vweird.f32 %v532
        %vm539 = vweird.f32 %v533
        %vm540 = vmor %vm538, %vm539
        %v541 = vsel %vm540, %v533, %v537
        %v542 = vand.u32 2147483647, %v532
        %vm543 = vcmp.eq.f32.partialorder %v542, 8.507059e+37
        %v544 = vand.u32 %v532, 2147483648
        %v545 = vor.u32 1.1754944e-38, %v544
        %v546 = vsel %vm543, %v545, %v541
        %v547 = vmul.f32 1.0, %v546
        %v548 = vmul.f32 %v503, %v547
        %v549 = vmul.f32 %v548, %v527
        %v550 = vld [vmem:[%s347] sm:$0xff]
        %v551 = vld [vmem:[%s347 + $0x8] sm:$0xff]
        %vm552 = vcmask 130048
        %v554 = vsel %vm552, %v549, 0
        %556 = vmatpush.msra.mxu0 0.0
        %557 = vmatpush.msra.mxu0 0.0
        %558 = vmatpush.msra.mxu0 0.0
        %559 = vmatpush.msra.mxu0 0.0
        %560 = vmatpush.msra.mxu0 0.0
        %561 = vmatpush.msra.mxu0 0.0
        %562 = vmatpush.msra.mxu0 0.0
        %563 = vmatpush.msra.mxu0 0.0
        %564 = vmatpush.msra.mxu0 0.0
        %565 = vmatpush.msra.mxu0 0.0
        %566 = vmatpush.msra.mxu0 0.0
        %567 = vmatpush.msra.mxu0 0.0
        %568 = vmatpush.msra.mxu0 0.0
        %569 = vmatpush.msra.mxu0 0.0
        %570 = vmatpush.msra.mxu0 %v551
        %571 = vmatpush.msra.mxu0 %v550
        %572 = vmatmul.f32.gmra.mxu0 %v554
        %v573 = vpop.f32.mrf.mxu0
        %v574 = vadd.f32 0.0, %v573
        %575 = vdwg.mxu0
        %v576 = vlaneseq
        %v577 = vand.u32 %v576, 127
        %v578 = vstv %s24
        %vm579 = vcmp.eq.s32.totalorder %v577, %v578
        %v580 = vld [vmem:[#allocation3] sm:$0x3]
        %v581 = vsel %vm579, %v580, 0.0
        %vm582 = vcmask 25600
        %v583 = vsel %vm582, %v581, 0.0
        %584 = vadd.xlane.f32.xlu0 %v583
        %v585 = vpop.xlane.xlu0 %584
        %v586 = vld [vmem:[#allocation2] sm:$0x3]
        %v587 = vmul.f32 %v585, %v574
        %v588 = vadd.f32 %v586, %v587
        %vm589 = vcmask 254976
        %590 = vst.msk [vmem:[#allocation2] sm:$0x3] %vm589, %v588
        // Predicated region
        $region49: #{tpu_custom_call.1} parent=43 // pred_check
          _
        $region50: #{tpu_custom_call.1} parent=43 // pred_check_branch
          %592 = sbr.rel (%p362) target = $region52
        $region51: #{tpu_custom_call.1} parent=43 // pred_region
          %v593 = vld [vmem:[#allocation2] sm:$0x3]
          %594 = vst.msk [vmem:[#allocation4] sm:$0x3] %vm589, %v593
        $region52: #{tpu_custom_call.1} parent=43 // pred_fallthru
          _
        // Predicated region
        $region53: #{tpu_custom_call.1} parent=43 // pred_check
          %p595 = pneg %p207
        $region54: #{tpu_custom_call.1} parent=43 // pred_check_branch
          %597 = sbr.rel (%p595) target = $region56
        $region55: #{tpu_custom_call.1} parent=43 // pred_region
          %599 = vsyncadd [#allocation5], 0
          %s600 = smul.addr %s23, 2
          %s601 = scalar_lea.hbm %s6, %s600
          %s603 = sshll.u32 [#allocation4], 4
          %s604 = int_to_ptr.vmem [resolvable:$true] %s603
          %s605 = sshll.u32 %s601, 4
          %s606 = int_to_ptr.hbm [resolvable:$true] %s605
          %608 = dma.vmem_to_hbm [thread:$0]  %s604, 32, %s606, [#allocation5]
        $region56: #{tpu_custom_call.1} parent=43 // pred_fallthru
          _
        // Predicated region
        $region57: #{tpu_custom_call.1} parent=43 // pred_check
          %p609 = pneg %p207
        $region58: #{tpu_custom_call.1} parent=43 // pred_check_branch
          %611 = sbr.rel (%p609) target = $region60
        $region59: #{tpu_custom_call.1} parent=43 // pred_region
          %613 = dma.done [#allocation5], 32
        $region60: #{tpu_custom_call.1} parent=43 // pred_fallthru
          _
      $region44: #{tpu_custom_call.1} parent=5 // pred_fallthru
        _
      %p614 = scmp.le.s32.totalorder 2, %s13
      // Predicated region
      $region61: #{tpu_custom_call.1} parent=5 // pred_check
        %p615 = pneg %p614
      $region62: #{tpu_custom_call.1} parent=5 // pred_check_branch
        %617 = sbr.rel (%p615) target = $region64
      $region63: #{tpu_custom_call.1} parent=5 // pred_region
        %s618 = ssub.s32 %s13, 2
      $region64: #{tpu_custom_call.1} parent=5 // pred_fallthru
        _
    $region6: #{tpu_custom_call.1} parent=1 // loop_footer
      %s17 = sadd.s32 1, %s13
    $region7: #{tpu_custom_call.1} parent=1 // loop_footer_branch
      %12 = sbr.rel target = $region3
    $region8: #{tpu_custom_call.1} parent=1 // loop_exit
      _
    %619 = vsyncpa [#allocation5], 1
    %s620 = scalar_lea.sflag [#allocation5], 1
    %621 = vsyncpa %s620, 1

</llo_original>
